<compile_context>
chip_gen: v7x
topology: tpu7x:2x2x1
jax: 0.10.0
libtpu: 0.0.40
codegen_flags: <defaults>
</compile_context>

<pallas_src>
import functools

import jax
import jax.numpy as jnp
from jax import lax
from jax.experimental import pallas as pl
from jax.experimental.pallas import tpu as pltpu


def _round_up(n, m):
    return ((n + m - 1) // m) * m


def _cond_ln_kernel(x_ref, gb_ref, o_ref, *, eps, inv_d):
    # x_ref: (1, t_tile, Dp)  gb_ref: (1, 2, Dp)  o_ref: (1, t_tile, Dp)
    x = x_ref[...].astype(jnp.float32)

    # One-pass stats over the feature axis. Padded lanes are zero, so dividing
    # by the real D (inv_d) gives exact mean / E[x^2].
    mean = jnp.sum(x, axis=-1, keepdims=True) * inv_d            # (1, t, 1)
    ex2 = jnp.sum(x * x, axis=-1, keepdims=True) * inv_d         # (1, t, 1)
    var = jnp.maximum(ex2 - mean * mean, 0.0)                    # clamp: 1-pass var

    gb = gb_ref[...].astype(jnp.float32)                         # (1, 2, Dp)
    gamma = gb[:, 0:1, :]                                        # (1, 1, Dp)
    beta = gb[:, 1:2, :]                                         # (1, 1, Dp)

    # Fused normalization + conditional affine:  out = x * scale + shift
    scale = gamma * lax.rsqrt(var + eps)
    shift = beta - mean * scale
    o_ref[...] = (x * scale + shift).astype(o_ref.dtype)


def _choose_t_tile(T, d_pad, itemsize):
    # Target roughly 1 MiB per input tile (in the HBM dtype), rows a multiple
    # of 8 so the (8, 128) block constraint is always satisfied.
    target_bytes = 1 << 20
    t = max(1, target_bytes // (d_pad * itemsize))
    t = min(t, _round_up(T, 8))
    t = max(8, (t // 8) * 8)
    return t


def cond_layer_norm(x, noise_level, embed_weight, *, eps=1e-6, bias=True,
                    t_tile=None):
    """x: (B, T, D); noise_level: (B,) int; embed_weight: (num_classes, 2*D)
    if bias else (num_classes, D).  Returns (B, T, D)."""
    B, T, D = x.shape

    # Embedding lookup (gather) — glue in plain JAX.
    # TODO(synk): could be folded into the kernel with scalar prefetch
    # (num_scalar_prefetch=1, index_map on embed_weight = lambda b,t,nl: (nl[b], 0)).
    emb = jnp.take(embed_weight, noise_level, axis=0)            # (B, 2D) or (B, D)
    if bias:
        gamma, beta = emb[:, :D], emb[:, D:]
    else:
        gamma, beta = emb, jnp.zeros_like(emb)
    gb = jnp.stack([gamma, beta], axis=1)                        # (B, 2, D)

    # Lane-dense layout: pad D to a multiple of 128, T to a multiple of t_tile.
    d_pad = _round_up(D, 128)
    itemsize = jnp.dtype(x.dtype).itemsize
    if t_tile is None:
        t_tile = _choose_t_tile(T, d_pad, itemsize)
    assert t_tile % 8 == 0, "t_tile must be a multiple of 8"
    t_pad = _round_up(T, t_tile)

    xp = x
    if d_pad != D or t_pad != T:
        xp = jnp.pad(x, ((0, 0), (0, t_pad - T), (0, d_pad - D)))
    gbp = gb if d_pad == D else jnp.pad(gb, ((0, 0), (0, 0), (0, d_pad - D)))

    grid = (B, t_pad // t_tile)
    kernel = functools.partial(_cond_ln_kernel, eps=eps, inv_d=1.0 / D)

    out = pl.pallas_call(
        kernel,
        out_shape=jax.ShapeDtypeStruct((B, t_pad, d_pad), x.dtype),
        grid_spec=pltpu.PrefetchScalarGridSpec(
            num_scalar_prefetch=0,
            grid=grid,
            in_specs=[
                pl.BlockSpec((1, t_tile, d_pad), lambda b, t: (b, t, 0)),
                pl.BlockSpec((1, 2, d_pad), lambda b, t: (b, 0, 0)),
            ],
            out_specs=pl.BlockSpec((1, t_tile, d_pad), lambda b, t: (b, t, 0)),
        ),
        compiler_params=pltpu.CompilerParams(
            dimension_semantics=("parallel", "parallel"),
            vmem_limit_bytes=32 * 1024 * 1024,   # safe on v5e/v6e and v7x (64 MiB)
        ),
    )(xp, gbp)

    if d_pad != D or t_pad != T:
        out = out[:, :T, :D]
    return out


def _reference(x, noise_level, embed_weight, *, eps=1e-6, bias=True):
    B, T, D = x.shape
    xf = x.astype(jnp.float32)
    mean = jnp.mean(xf, axis=-1, keepdims=True)
    var = jnp.mean((xf - mean) ** 2, axis=-1, keepdims=True)
    out = (xf - mean) / jnp.sqrt(var + eps)
    emb = jnp.take(embed_weight, noise_level, axis=0)[:, None, :]  # (B, 1, *)
    if bias:
        gamma, beta = emb[..., :D], emb[..., D:]
        out = gamma * out + beta
    else:
        out = emb * out
    return out.astype(x.dtype)


if __name__ == "__main__":
    key = jax.random.PRNGKey(0)
    kx, kw, kn = jax.random.split(key, 3)

    B, T, D = 2, 8, 32
    num_classes = 10
    bias = True

    x = jax.random.normal(kx, (B, T, D), dtype=jnp.float32)
    noise_level = jax.random.randint(kn, (B,), 0, num_classes, dtype=jnp.int32)

    # NOTE: the PyTorch module zero-initializes the embedding weights; here we
    # use a deterministic random init so the kernel math is actually exercised.
    embed_weight = 0.1 * jax.random.normal(
        kw, (num_classes, 2 * D if bias else D), dtype=jnp.float32)

    out = cond_layer_norm(x, noise_level, embed_weight, eps=1e-6, bias=bias)
    out = jax.block_until_ready(out)

    ref = _reference(x, noise_level, embed_weight, eps=1e-6, bias=bias)
    assert out.shape == (B, T, D)
    assert jnp.allclose(out, ref, atol=2e-5, rtol=1e-5), (
        float(jnp.max(jnp.abs(out - ref))))

    print("KERNEL_OK")
</pallas_src>

<mosaic_0001>
module attributes {stable_mosaic.version = 11 : i64} {
  func.func @_cond_ln_kernel(%arg0: i32, %arg1: i32, %arg2: memref<1x8x128xf32, #tpu.memory_space<vmem>>, %arg3: memref<1x2x128xf32, #tpu.memory_space<vmem>>, %arg4: memref<1x8x128xf32, #tpu.memory_space<vmem>>) attributes {dimension_semantics = [#tpu.dimension_semantics<parallel>, #tpu.dimension_semantics<parallel>], iteration_bounds = array<i64: 2, 1>, scalar_prefetch = 0 : i64, scratch_operands = 0 : i64, tpu.core_type = #tpu.core_type<tc>, window_params = [{transform_indices = @transform_0, window_bounds = array<i64: 1, 8, 128>}, {transform_indices = @transform_1, window_bounds = array<i64: 1, 2, 128>}, {transform_indices = @transform_2, window_bounds = array<i64: 1, 8, 128>}]} {
    %c0 = arith.constant 0 : index
    %c0_0 = arith.constant 0 : index
    %c0_1 = arith.constant 0 : index
    %0 = vector.load %arg2[%c0, %c0_0, %c0_1] : memref<1x8x128xf32, #tpu.memory_space<vmem>>, vector<1x8x128xf32>
    %cst = arith.constant dense<0.000000e+00> : vector<1x8xf32>
    %1 = vector.multi_reduction <add>, %0, %cst [2] : vector<1x8x128xf32> to vector<1x8xf32>
    %2 = vector.shape_cast %1 : vector<1x8xf32> to vector<1x8x1xf32>
    %cst_2 = arith.constant 3.125000e-02 : f32
    %3 = vector.broadcast %cst_2 : f32 to vector<1x8x1xf32>
    %4 = arith.mulf %2, %3 : vector<1x8x1xf32>
    %5 = arith.mulf %0, %0 : vector<1x8x128xf32>
    %cst_3 = arith.constant dense<0.000000e+00> : vector<1x8xf32>
    %6 = vector.multi_reduction <add>, %5, %cst_3 [2] : vector<1x8x128xf32> to vector<1x8xf32>
    %7 = vector.shape_cast %6 : vector<1x8xf32> to vector<1x8x1xf32>
    %cst_4 = arith.constant 3.125000e-02 : f32
    %8 = vector.broadcast %cst_4 : f32 to vector<1x8x1xf32>
    %9 = arith.mulf %7, %8 : vector<1x8x1xf32>
    %10 = arith.mulf %4, %4 : vector<1x8x1xf32>
    %11 = arith.subf %9, %10 : vector<1x8x1xf32>
    %cst_5 = arith.constant 0.000000e+00 : f32
    %12 = vector.broadcast %cst_5 : f32 to vector<1x8x1xf32>
    %13 = arith.maximumf %11, %12 : vector<1x8x1xf32>
    %c0_6 = arith.constant 0 : index
    %c0_7 = arith.constant 0 : index
    %c0_8 = arith.constant 0 : index
    %14 = vector.load %arg3[%c0_6, %c0_7, %c0_8] : memref<1x2x128xf32, #tpu.memory_space<vmem>>, vector<1x2x128xf32>
    %15 = vector.extract_strided_slice %14 {offsets = [0, 0, 0], sizes = [1, 1, 128], strides = [1, 1, 1]} : vector<1x2x128xf32> to vector<1x1x128xf32>
    %16 = vector.extract_strided_slice %14 {offsets = [0, 1, 0], sizes = [1, 1, 128], strides = [1, 1, 1]} : vector<1x2x128xf32> to vector<1x1x128xf32>
    %cst_9 = arith.constant 9.99999997E-7 : f32
    %17 = vector.broadcast %cst_9 : f32 to vector<1x8x1xf32>
    %18 = arith.addf %13, %17 : vector<1x8x1xf32>
    %19 = math.rsqrt %18 : vector<1x8x1xf32>
    %20 = vector.broadcast %15 : vector<1x1x128xf32> to vector<1x8x128xf32>
    %21 = vector.broadcast %19 : vector<1x8x1xf32> to vector<1x8x128xf32>
    %22 = arith.mulf %20, %21 : vector<1x8x128xf32>
    %23 = vector.broadcast %4 : vector<1x8x1xf32> to vector<1x8x128xf32>
    %24 = arith.mulf %23, %22 : vector<1x8x128xf32>
    %25 = vector.broadcast %16 : vector<1x1x128xf32> to vector<1x8x128xf32>
    %26 = arith.subf %25, %24 : vector<1x8x128xf32>
    %27 = arith.mulf %0, %22 : vector<1x8x128xf32>
    %28 = arith.addf %27, %26 : vector<1x8x128xf32>
    %c0_10 = arith.constant 0 : index
    %c0_11 = arith.constant 0 : index
    %c0_12 = arith.constant 0 : index
    %29 = vector.load %arg4[%c0_10, %c0_11, %c0_12] : memref<1x8x128xf32, #tpu.memory_space<vmem>>, vector<1x8x128xf32>
    tpu.vector_store %arg4[%c0_10, %c0_11, %c0_12], %28 {strides = array<i32>} : memref<1x8x128xf32, #tpu.memory_space<vmem>>, vector<1x8x128xf32>,
    return
  }
  func.func @transform_0(%arg0: i32, %arg1: i32) -> (i32, i32, i32) {
    %c0_i32 = arith.constant 0 : i32
    %c0_i32_0 = arith.constant 0 : i32
    return %arg0, %arg1, %c0_i32 : i32, i32, i32
  }
  func.func @transform_1(%arg0: i32, %arg1: i32) -> (i32, i32, i32) {
    %c0_i32 = arith.constant 0 : i32
    %c0_i32_0 = arith.constant 0 : i32
    %c0_i32_1 = arith.constant 0 : i32
    return %arg0, %c0_i32, %c0_i32_0 : i32, i32, i32
  }
  func.func @transform_2(%arg0: i32, %arg1: i32) -> (i32, i32, i32) {
    %c0_i32 = arith.constant 0 : i32
    %c0_i32_0 = arith.constant 0 : i32
    return %arg0, %arg1, %c0_i32 : i32, i32, i32
  }
}

</mosaic_0001>

<llo_original>
// kernel: tpu_custom_call.1
$region0: #{tpu_custom_call.1}
  #allocation0 [shape = 'u32[]', space=smem, size = 0x4, offset = 0x4, fixed_abs, tag = 'smem constant byte address 0x4 - core index']
  #allocation1 [shape = 'u32[144,128]{1,0:T(1,128)}', space=vmem, size = 0x12000, scoped, tag = 'internal scratch']
  %s0 = inlined_call_operand.hbm [shape: f32[2,8,128], index: 0, kind: input, shape index: {}]
  %s1 = inlined_call_operand.hbm [shape: f32[2,2,128], index: 1, kind: input, shape index: {}]
  %s2 = inlined_call_operand.hbm [shape: f32[2,8,128], index: 2, kind: output, shape index: {}]
  %s3 = sld [smem:[#allocation0]]
  $region49: #{tpu_custom_call.1} parent=0
    _
  %s5 = ssub.s32 1, %s3
  %s6 = scalar_select 0, %s5, %s3
  $region1: #{tpu_custom_call.1} parent=0
    #allocation2 [shape = 'u8[8192]{0}', space=vmem, size = 0x2000, scoped, tag = 'input window, operand 0']
    #allocation3 [shape = 's32[2]{0}', space=sflag, size = 0x8, scoped, tag = 'scoped memory for tpu_custom_call.1']
    #allocation4 [shape = 's32[2]{0}', space=sflag, size = 0x8, scoped, tag = 'scoped memory for tpu_custom_call.1']
    #allocation5 [shape = 'u8[2048]{0}', space=vmem, size = 0x800, scoped, tag = 'input window, operand 1']
    #allocation6 [shape = 's32[2]{0}', space=sflag, size = 0x8, scoped, tag = 'scoped memory for tpu_custom_call.1']
    #allocation7 [shape = 'u8[8192]{0}', space=vmem, size = 0x2000, scoped, tag = 'output window, operand 0']
    %7 = vsyncpa [#allocation3], 0
    %s8 = scalar_lea.sflag [#allocation3], 1
    %9 = vsyncpa %s8, 0
    %10 = vsyncpa [#allocation6], 0
    %s11 = scalar_lea.sflag [#allocation6], 1
    %12 = vsyncpa %s11, 0
    %13 = vsyncpa [#allocation4], 0
    %s14 = scalar_lea.sflag [#allocation4], 1
    %15 = vsyncpa %s14, 0
    loop: start=0, step=1, limit=4
    $region2: #{tpu_custom_call.1} parent=1 // loop_pre_header
      _
    $region3: #{tpu_custom_call.1} parent=1 // loop_header
      %s17 = sphi 0, %s21
      %p18 = scmp.ge.s32.totalorder %s17, 4
      %s24 = sphi 0, %s36
      %s25 = sphi 0, %s32
      %s26 = sphi 0, %s24
      %s27 = sphi 0, %s25
      %s28 = sphi 0, %s26
      %s29 = sphi 0, %s27
      %s41 = sphi 0, %s43
      %s44 = sphi 0, %s41
      %s45 = sphi 0, %s44
      %s61 = sphi 0, %s45
      %s67 = sphi 0, %s69
      %s70 = sphi 0, %s67
      %s71 = sphi 0, %s70
      %s87 = sphi 0, %s71
      %s95 = sphi 0, %s97
      %s98 = sphi 0, %s95
      %s99 = sphi 0, %s98
      %s115 = sphi 0, %s99
    $region4: #{tpu_custom_call.1} parent=1 // loop_header_branch
      %20 = sbr.rel (%p18) target = $region8
    $region5: #{tpu_custom_call.1} parent=1 // loop_body
      %s22 = ssub.s32 %s17, 1
      %s23 = ssub.s32 %s17, 2
      %s30 = sadd.s32 1, %s25
      %p31 = scmp.ge.s32.totalorder %s30, 1
      %s32 = scalar_select %p31, 0, %s30
      %s33 = sadd.s32 1, %s24
      %s34 = scalar_select %p31, %s33, %s24
      %p35 = scmp.ge.s32.totalorder %s34, 2
      %s36 = scalar_select %p35, 0, %s34
      %s37 = ssub.s32 %s24, %s36
      %s38 = ssub.s32 %s25, %s32
      %s39 = sor.u32 %s37, %s38
      %p40 = scmp.eq.s32.totalorder %s39, 0
      %s42 = sadd.s32 %s41, 1
      %s43 = scalar_select %p40, %s41, %s42
      %p46 = pneg %p40
      %p47 = scmp.eq.s32.totalorder %s17, 1
      %p48 = por %p46, %p47
      %p49 = scmp.ne.s32.totalorder %s41, %s44
      %p50 = scmp.eq.s32.totalorder %s17, 0
      %p51 = por %p49, %p50
      %p52 = scmp.ne.s32.totalorder %s41, %s44
      %p53 = scmp.eq.s32.totalorder %s22, 1
      %p54 = por %p52, %p53
      %p55 = scmp.ne.s32.totalorder %s44, %s45
      %p56 = scmp.eq.s32.totalorder %s22, 0
      %p57 = por %p55, %p56
      %p58 = scmp.ne.s32.totalorder %s44, %s45
      %p59 = scmp.eq.s32.totalorder %s23, 1
      %p60 = por %p58, %p59
      %p62 = scmp.ne.s32.totalorder %s45, %s61
      %p63 = scmp.eq.s32.totalorder %s23, 0
      %p64 = por %p62, %p63
      %s65 = ssub.s32 %s24, %s36
      %p66 = scmp.eq.s32.totalorder %s65, 0
      %s68 = sadd.s32 %s67, 1
      %s69 = scalar_select %p66, %s67, %s68
      %p72 = pneg %p66
      %p73 = scmp.eq.s32.totalorder %s17, 1
      %p74 = por %p72, %p73
      %p75 = scmp.ne.s32.totalorder %s67, %s70
      %p76 = scmp.eq.s32.totalorder %s17, 0
      %p77 = por %p75, %p76
      %p78 = scmp.ne.s32.totalorder %s67, %s70
      %p79 = scmp.eq.s32.totalorder %s22, 1
      %p80 = por %p78, %p79
      %p81 = scmp.ne.s32.totalorder %s70, %s71
      %p82 = scmp.eq.s32.totalorder %s22, 0
      %p83 = por %p81, %p82
      %p84 = scmp.ne.s32.totalorder %s70, %s71
      %p85 = scmp.eq.s32.totalorder %s23, 1
      %p86 = por %p84, %p85
      %p88 = scmp.ne.s32.totalorder %s71, %s87
      %p89 = scmp.eq.s32.totalorder %s23, 0
      %p90 = por %p88, %p89
      %s91 = ssub.s32 %s24, %s36
      %s92 = ssub.s32 %s25, %s32
      %s93 = sor.u32 %s91, %s92
      %p94 = scmp.eq.s32.totalorder %s93, 0
      %s96 = sadd.s32 %s95, 1
      %s97 = scalar_select %p94, %s95, %s96
      %p100 = pneg %p94
      %p101 = scmp.eq.s32.totalorder %s17, 1
      %p102 = por %p100, %p101
      %p103 = scmp.ne.s32.totalorder %s95, %s98
      %p104 = scmp.eq.s32.totalorder %s17, 0
      %p105 = por %p103, %p104
      %p106 = scmp.ne.s32.totalorder %s95, %s98
      %p107 = scmp.eq.s32.totalorder %s22, 1
      %p108 = por %p106, %p107
      %p109 = scmp.ne.s32.totalorder %s98, %s99
      %p110 = scmp.eq.s32.totalorder %s22, 0
      %p111 = por %p109, %p110
      %p112 = scmp.ne.s32.totalorder %s98, %s99
      %p113 = scmp.eq.s32.totalorder %s23, 1
      %p114 = por %p112, %p113
      %p116 = scmp.ne.s32.totalorder %s99, %s115
      %p117 = scmp.eq.s32.totalorder %s23, 0
      %p118 = por %p116, %p117
      %p119 = scmp.le.s32.totalorder 1, %s17
      %p120 = scmp.lt.s32.totalorder %s17, 3
      %p121 = pnand %p119, %p120
      %p122 = pneg %p121
      // Predicated region
      $region9: #{tpu_custom_call.1} parent=5 // pred_check
        _
      $region10: #{tpu_custom_call.1} parent=5 // pred_check_branch
        %124 = sbr.rel (%p121) target = $region12
      $region11: #{tpu_custom_call.1} parent=5 // pred_region
        %s125 = ssub.s32 %s17, 1
      $region12: #{tpu_custom_call.1} parent=5 // pred_fallthru
        _
      %p126 = scmp.lt.s32.totalorder %s17, 2
      // Predicated region
      $region13: #{tpu_custom_call.1} parent=5 // pred_check
        %p127 = pneg %p126
      $region14: #{tpu_custom_call.1} parent=5 // pred_check_branch
        %129 = sbr.rel (%p127) target = $region16
      $region15: #{tpu_custom_call.1} parent=5 // pred_region
        // Predicated region
        $region17: #{tpu_custom_call.1} parent=15 // pred_check
          %p130 = pneg %p51
        $region18: #{tpu_custom_call.1} parent=15 // pred_check_branch
          %132 = sbr.rel (%p130) target = $region20
        $region19: #{tpu_custom_call.1} parent=15 // pred_region
          %s133 = sand.u32 %s41, 1
          %s134 = scalar_lea.sflag [#allocation3], %s133
          %s135 = sand.u32 %s41, 1
          %s136 = smul.addr %s135, 8
          %s137 = scalar_lea.vmem [#allocation2], %s136
          %s139 = ssub.s32 128, 128
          %140 = vsyncadd %s134, %s139
          %s141 = sadd.s32 %s25, %s24
          %s142 = smul.addr %s141, 128
          %s143 = scalar_lea.hbm %s0, %s142
          %s145 = sshll.u32 %s137, 4
          %s146 = int_to_ptr.vmem [resolvable:$true] %s145
          %148 = dma.hbm_to_vmem [thread:$0]  %s143, 128, %s146, %s134
        $region20: #{tpu_custom_call.1} parent=15 // pred_fallthru
          _
        // Predicated region
        $region21: #{tpu_custom_call.1} parent=15 // pred_check
          %p149 = pneg %p77
        $region22: #{tpu_custom_call.1} parent=15 // pred_check_branch
          %151 = sbr.rel (%p149) target = $region24
        $region23: #{tpu_custom_call.1} parent=15 // pred_region
          %s152 = sand.u32 %s67, 1
          %s153 = scalar_lea.sflag [#allocation6], %s152
          %s154 = sand.u32 %s67, 1
          %s155 = smul.addr %s154, 2
          %s156 = scalar_lea.vmem [#allocation5], %s155
          %s158 = ssub.s32 32, 32
          %159 = vsyncadd %s153, %s158
          %s160 = smul.addr %s24, 32
          %s161 = scalar_lea.hbm %s1, %s160
          %s163 = sshll.u32 %s156, 4
          %s164 = int_to_ptr.vmem [resolvable:$true] %s163
          %166 = dma.hbm_to_vmem [thread:$0]  %s161, 32, %s164, %s153
        $region24: #{tpu_custom_call.1} parent=15 // pred_fallthru
          _
      $region16: #{tpu_custom_call.1} parent=5 // pred_fallthru
        _
      %p167 = scmp.le.s32.totalorder 1, %s17
      %p168 = scmp.lt.s32.totalorder %s17, 3
      %p169 = pnand %p167, %p168
      %p170 = pneg %p169
      // Predicated region
      $region25: #{tpu_custom_call.1} parent=5 // pred_check
        _
      $region26: #{tpu_custom_call.1} parent=5 // pred_check_branch
        %172 = sbr.rel (%p169) target = $region28
      $region27: #{tpu_custom_call.1} parent=5 // pred_region
        %s173 = ssub.s32 %s17, 1
        %s174 = sand.u32 %s44, 1
        %s175 = scalar_lea.sflag [#allocation3], %s174
        %s176 = sand.u32 %s44, 1
        %s177 = smul.addr %s176, 8
        %s178 = scalar_lea.vmem [#allocation2], %s177
        // Predicated region
        $region29: #{tpu_custom_call.1} parent=27 // pred_check
          %p179 = pneg %p57
        $region30: #{tpu_custom_call.1} parent=27 // pred_check_branch
          %181 = sbr.rel (%p179) target = $region32
        $region31: #{tpu_custom_call.1} parent=27 // pred_region
          %182 = dma.done %s175, 128
        $region32: #{tpu_custom_call.1} parent=27 // pred_fallthru
          _
        %s183 = sand.u32 %s70, 1
        %s184 = scalar_lea.sflag [#allocation6], %s183
        %s185 = sand.u32 %s70, 1
        %s186 = smul.addr %s185, 2
        %s187 = scalar_lea.vmem [#allocation5], %s186
        // Predicated region
        $region33: #{tpu_custom_call.1} parent=27 // pred_check
          %p188 = pneg %p83
        $region34: #{tpu_custom_call.1} parent=27 // pred_check_branch
          %190 = sbr.rel (%p188) target = $region36
        $region35: #{tpu_custom_call.1} parent=27 // pred_region
          %191 = dma.done %s184, 32
        $region36: #{tpu_custom_call.1} parent=27 // pred_fallthru
          _
        %s192 = sand.u32 %s44, 1
        %s193 = scalar_lea.sflag [#allocation3], %s192
        %s194 = sand.u32 %s44, 1
        %s195 = smul.addr %s194, 8
        %s196 = scalar_lea.vmem [#allocation2], %s195
        %p197 = pneg %p57
        %p198 = pneg %p54
        %s199 = sand.u32 %s70, 1
        %s200 = scalar_lea.sflag [#allocation6], %s199
        %s201 = sand.u32 %s70, 1
        %s202 = smul.addr %s201, 2
        %s203 = scalar_lea.vmem [#allocation5], %s202
        %p204 = pneg %p83
        %p205 = pneg %p80
        %p206 = pneg %p111
        %p207 = pneg %p108
        %s208 = sand.u32 %s98, 1
        %s209 = scalar_lea.sflag [#allocation4], %s208
        %s210 = sand.u32 %s98, 1
        %s211 = smul.addr %s210, 8
        %s212 = scalar_lea.vmem [#allocation7], %s211
        %v213 = vld [vmem:[%s178] sm:$0xff]
        %214 = vadd.xlane.f32.xlu0 %v213
        %v215 = vpop.xlane.xlu0 %214
        %v216 = vmul.f32 %v215, 0.03125
        %v217 = vmul.f32 %v213, %v213
        %218 = vadd.xlane.f32.xlu0 %v217
        %v219 = vpop.xlane.xlu0 %218
        %v220 = vmul.f32 %v219, 0.03125
        %v221 = vmul.f32 %v216, %v216
        %v222 = vsub.f32 %v220, %v221
        %v223 = vmax.f32 %v222, 0.0
        %v224 = vld [vmem:[%s187] sm:$0x3]
        %v225 = vadd.f32 %v223, 1e-06
        %v226 = vrsqrt.pop %v225
        %v227 = vlaneseq
        %v228 = vshrl.u32 %v227, 7
        %v229 = vsub.s32 0, %v228
        %v230 = vrot.slane %v224, %v229
        %v231 = vmul.f32 %v230, %v226
        %v232 = vmul.f32 %v216, %v231
        %v233 = vlaneseq
        %v234 = vshrl.u32 %v233, 7
        %v235 = vsub.s32 1, %v234
        %v236 = vrot.slane %v224, %v235
        %v237 = vsub.f32 %v236, %v232
        %v238 = vmul.f32 %v213, %v231
        %v239 = vadd.f32 %v238, %v237
        %240 = vst [vmem:[%s212] sm:$0xff] %v239
        %s241 = sand.u32 %s98, 1
        %s242 = scalar_lea.sflag [#allocation4], %s241
        %s243 = sand.u32 %s98, 1
        %s244 = smul.addr %s243, 8
        %s245 = scalar_lea.vmem [#allocation7], %s244
        // Predicated region
        $region37: #{tpu_custom_call.1} parent=27 // pred_check
          %p246 = pneg %p108
        $region38: #{tpu_custom_call.1} parent=27 // pred_check_branch
          %248 = sbr.rel (%p246) target = $region40
        $region39: #{tpu_custom_call.1} parent=27 // pred_region
          %s250 = ssub.s32 128, 128
          %251 = vsyncadd %s242, %s250
          %s252 = sadd.s32 %s27, %s26
          %s253 = smul.addr %s252, 128
          %s254 = scalar_lea.hbm %s2, %s253
          %s256 = sshll.u32 %s245, 4
          %s257 = int_to_ptr.vmem [resolvable:$true] %s256
          %259 = dma.vmem_to_hbm [thread:$0]  %s257, 128, %s254, %s242
        $region40: #{tpu_custom_call.1} parent=27 // pred_fallthru
          _
      $region28: #{tpu_custom_call.1} parent=5 // pred_fallthru
        _
      %p260 = scmp.le.s32.totalorder 2, %s17
      // Predicated region
      $region41: #{tpu_custom_call.1} parent=5 // pred_check
        %p261 = pneg %p260
      $region42: #{tpu_custom_call.1} parent=5 // pred_check_branch
        %263 = sbr.rel (%p261) target = $region44
      $region43: #{tpu_custom_call.1} parent=5 // pred_region
        %s264 = ssub.s32 %s17, 2
        // Predicated region
        $region45: #{tpu_custom_call.1} parent=43 // pred_check
          %p265 = pneg %p114
        $region46: #{tpu_custom_call.1} parent=43 // pred_check_branch
          %267 = sbr.rel (%p265) target = $region48
        $region47: #{tpu_custom_call.1} parent=43 // pred_region
          %s268 = sand.u32 %s99, 1
          %s269 = scalar_lea.sflag [#allocation4], %s268
          %s270 = sand.u32 %s99, 1
          %s271 = smul.addr %s270, 8
          %s272 = scalar_lea.vmem [#allocation7], %s271
          %273 = dma.done %s269, 128
        $region48: #{tpu_custom_call.1} parent=43 // pred_fallthru
          _
      $region44: #{tpu_custom_call.1} parent=5 // pred_fallthru
        _
    $region6: #{tpu_custom_call.1} parent=1 // loop_footer
      %s21 = sadd.s32 1, %s17
    $region7: #{tpu_custom_call.1} parent=1 // loop_footer_branch
      %16 = sbr.rel target = $region3
    $region8: #{tpu_custom_call.1} parent=1 // loop_exit
      _
    %274 = vsyncpa [#allocation3], 1
    %s275 = scalar_lea.sflag [#allocation3], 1
    %276 = vsyncpa %s275, 1
    %277 = vsyncpa [#allocation6], 1
    %s278 = scalar_lea.sflag [#allocation6], 1
    %279 = vsyncpa %s278, 1
    %280 = vsyncpa [#allocation4], 1
    %s281 = scalar_lea.sflag [#allocation4], 1
    %282 = vsyncpa %s281, 1

</llo_original>
